<compile_context>
chip_gen: v5e
topology: v5e:2x2
jax: 0.10.0
libtpu: 0.0.40
codegen_flags: <defaults>
</compile_context>

<pallas_src>
import functools

import jax
import jax.numpy as jnp
from jax.experimental import pallas as pl
from jax.experimental.pallas import tpu as pltpu

_H1 = 128          # fc1 out features (already lane-aligned)
_H2 = 64           # fc2 out features (padded to 128 inside the packed buffers)
_PAD = 128         # lane-dense padded width used internally for hidden layers


def _round_up(x, m):
    return ((x + m - 1) // m) * m


def _mlp_kernel(x_ref, w_ref, b_ref, o_ref):
    """One batch tile: o = (relu(relu(x@W1+b1)@W2+b2))@W3+b3 (true output width)."""
    in_p = x_ref.shape[1]                        # static padded input dim
    out_dim = o_ref.shape[1]                     # static true output dim
    w1 = w_ref[0:in_p, :]                        # [in_p, 128]
    w2 = w_ref[in_p:in_p + _PAD, :]              # [128, 128]  (cols >= 64 are zero)
    w3 = w_ref[in_p + _PAD:in_p + 2 * _PAD, :]   # [128, 128]  (cols >= out_dim are zero)
    b1 = b_ref[0:1, :]                           # f32 biases
    b2 = b_ref[1:2, :]
    b3 = b_ref[2:3, 0:out_dim]

    # Cast activations to the packed-weight dtype (no-op for f32 weights, bf16 path
    # for MXU-native bf16 on v6e/v7x).  Accumulation and elementwise stay f32.
    x = x_ref[...].astype(w_ref.dtype)
    h = jnp.dot(x, w1, preferred_element_type=jnp.float32)
    h = jnp.maximum(h + b1, 0.0)
    h = jnp.dot(h.astype(w_ref.dtype), w2, preferred_element_type=jnp.float32)
    h = jnp.maximum(h + b2, 0.0)
    h = jnp.dot(h.astype(w_ref.dtype), w3, preferred_element_type=jnp.float32)
    o_ref[...] = (h[:, 0:out_dim] + b3).astype(o_ref.dtype)


def pack_params(params, *, param_dtype=jnp.float32):
    """Pack weights/biases ONCE at model-load time (not in the per-call path).

    Weights are zero-padded lane-dense and concatenated into one buffer; biases are
    kept in f32 (bias-add / ReLU run in f32 on the VPU on all TPU generations).
    """
    input_dim = params["w1"].shape[0]
    output_dim = params["w3"].shape[1]
    in_p = _round_up(input_dim, 8)  # sublane-aligned so in-kernel slices are tile-aligned

    w1 = jnp.zeros((in_p, _PAD), param_dtype).at[:input_dim, :_H1].set(
        params["w1"].astype(param_dtype))
    w2 = jnp.zeros((_PAD, _PAD), param_dtype).at[:_H1, :_H2].set(
        params["w2"].astype(param_dtype))
    w3 = jnp.zeros((_PAD, _PAD), param_dtype).at[:_H2, :output_dim].set(
        params["w3"].astype(param_dtype))
    wbuf = jnp.concatenate([w1, w2, w3], axis=0)        # [in_p + 256, 128]

    b1 = jnp.zeros((1, _PAD), jnp.float32).at[:, :_H1].set(params["b1"].astype(jnp.float32))
    b2 = jnp.zeros((1, _PAD), jnp.float32).at[:, :_H2].set(params["b2"].astype(jnp.float32))
    b3 = jnp.zeros((1, _PAD), jnp.float32).at[:, :output_dim].set(
        params["b3"].astype(jnp.float32))
    bbuf = jnp.concatenate([b1, b2, b3], axis=0)        # [3, 128] f32
    return wbuf, bbuf, output_dim


def _default_tile(batch):
    """Batch-tile heuristic: big tiles to amortize ~0.35us/step overhead, but keep
    >= 2 grid steps for large batches so both v7x TensorCores get work."""
    if batch <= 256:
        return max(8, _round_up(batch, 8))              # single (possibly partial) tile
    return min(1024, _round_up(pl.cdiv(batch, 2), 8))   # >= 2 steps, capped at 1024 rows


@functools.partial(jax.jit, static_argnames=("output_dim", "tm"))
def action_chunking_mlp(x, wbuf, bbuf, *, output_dim, tm=None):
    """x: [batch, input_dim]. wbuf/bbuf: packed params from pack_params()."""
    batch, feat = x.shape
    in_p = wbuf.shape[0] - 2 * _PAD
    if feat != in_p:
        # Rare path: input_dim not a multiple of 8 -> pad features only (never batch).
        assert feat < in_p, (feat, in_p)
        x = jnp.zeros((batch, in_p), x.dtype).at[:, :feat].set(x)

    if tm is None:
        tm = _default_tile(batch)
    grid = (pl.cdiv(batch, tm),)

    itemsize = jnp.dtype(x.dtype).itemsize
    flops = 2 * batch * (in_p * _PAD + _PAD * _PAD + _PAD * _PAD)
    bytes_accessed = (batch * in_p * itemsize
                      + wbuf.size * jnp.dtype(wbuf.dtype).itemsize
                      + bbuf.size * jnp.dtype(bbuf.dtype).itemsize
                      + batch * output_dim * itemsize)

    return pl.pallas_call(
        _mlp_kernel,
        out_shape=jax.ShapeDtypeStruct((batch, output_dim), x.dtype),
        grid_spec=pl.GridSpec(
            grid=grid,
            in_specs=[
                pl.BlockSpec((tm, in_p), lambda i: (i, 0)),     # x: tiled over batch
                pl.BlockSpec(wbuf.shape, lambda i: (0, 0)),     # packed weights: resident
                pl.BlockSpec(bbuf.shape, lambda i: (0, 0)),     # packed biases: resident
            ],
            out_specs=pl.BlockSpec((tm, output_dim), lambda i: (i, 0)),  # true width
        ),
        compiler_params=pltpu.CompilerParams(
            dimension_semantics=("parallel",),
        ),
        cost_estimate=pl.CostEstimate(
            flops=flops, transcendentals=0, bytes_accessed=bytes_accessed),
    )(x, wbuf, bbuf)


def init_params(key, input_dim, output_dim, dtype=jnp.float32):
    """Deterministic synthetic init (Kaiming-uniform-ish, like nn.Linear)."""
    dims = [(input_dim, _H1), (_H1, _H2), (_H2, output_dim)]
    params = {}
    for i, (fan_in, fan_out) in enumerate(dims, start=1):
        key, kw, kb = jax.random.split(key, 3)
        bound = 1.0 / jnp.sqrt(fan_in)
        # stored as [in, out] (transposed vs PyTorch's [out, in])
        params[f"w{i}"] = jax.random.uniform(
            kw, (fan_in, fan_out), dtype, minval=-bound, maxval=bound)
        params[f"b{i}"] = jax.random.uniform(
            kb, (1, fan_out), dtype, minval=-bound, maxval=bound)
    return params


def _reference(x, p):
    h = jnp.maximum(x @ p["w1"] + p["b1"], 0.0)
    h = jnp.maximum(h @ p["w2"] + p["b2"], 0.0)
    return h @ p["w3"] + p["b3"]


if __name__ == "__main__":
    batch, input_dim, output_dim = 8, 32, 16
    key = jax.random.PRNGKey(0)
    kx, kp = jax.random.split(key)

    x = jax.random.normal(kx, (batch, input_dim), jnp.float32)
    params = init_params(kp, input_dim, output_dim)

    # Pack ONCE at model-load time (hoisted out of the per-call path).
    wbuf, bbuf, out_dim = pack_params(params)
    wbuf, bbuf = jax.block_until_ready((wbuf, bbuf))

    out = jax.block_until_ready(action_chunking_mlp(x, wbuf, bbuf, output_dim=out_dim))
    ref = _reference(x, params)
    assert out.shape == (batch, output_dim), out.shape
    assert jnp.allclose(out, ref, atol=1e-4, rtol=1e-4)

    # Batch that is not a tile multiple -> single partial block, masked output store.
    x2 = jax.random.normal(jax.random.PRNGKey(1), (37, input_dim), jnp.float32)
    out2 = jax.block_until_ready(action_chunking_mlp(x2, wbuf, bbuf, output_dim=out_dim))
    assert out2.shape == (37, output_dim)
    assert jnp.allclose(out2, _reference(x2, params), atol=1e-4, rtol=1e-4)

    # Larger batch -> >= 2 grid steps (both v7x TensorCores), last block partial.
    x3 = jax.random.normal(jax.random.PRNGKey(2), (600, input_dim), jnp.float32)
    out3 = jax.block_until_ready(action_chunking_mlp(x3, wbuf, bbuf, output_dim=out_dim))
    assert out3.shape == (600, output_dim)
    assert jnp.allclose(out3, _reference(x3, params), atol=1e-4, rtol=1e-4)

    # Optional bf16 weight path (MXU-native on v6e/v7x); looser parity as expected.
    wb16, bb16, _ = pack_params(params, param_dtype=jnp.bfloat16)
    out_b = jax.block_until_ready(action_chunking_mlp(x, wb16, bb16, output_dim=out_dim))
    assert jnp.allclose(out_b, ref, atol=5e-2, rtol=5e-2)

    print("KERNEL_OK")
</pallas_src>

<mosaic_0001>
module attributes {stable_mosaic.version = 11 : i64} {
  func.func @_mlp_kernel(%arg0: i32, %arg1: memref<8x32xf32, #tpu.memory_space<vmem>>, %arg2: memref<288x128xf32, #tpu.memory_space<vmem>>, %arg3: memref<3x128xf32, #tpu.memory_space<vmem>>, %arg4: memref<8x16xf32, #tpu.memory_space<vmem>>) attributes {dimension_semantics = [#tpu.dimension_semantics<parallel>], iteration_bounds = array<i64: 1>, scalar_prefetch = 0 : i64, scratch_operands = 0 : i64, tpu.core_type = #tpu.core_type<tc>, window_params = [{transform_indices = @transform_0, window_bounds = array<i64: 8, 32>}, {pipeline_mode = #tpu.pipeline_mode<synchronous>, transform_indices = @transform_1, window_bounds = array<i64: 288, 128>}, {pipeline_mode = #tpu.pipeline_mode<synchronous>, transform_indices = @transform_2, window_bounds = array<i64: 3, 128>}, {transform_indices = @transform_3, window_bounds = array<i64: 8, 16>}]} {
    %c0 = arith.constant 0 : index
    %c0_0 = arith.constant 0 : index
    %0 = vector.load %arg2[%c0, %c0_0] : memref<288x128xf32, #tpu.memory_space<vmem>>, vector<32x128xf32>
    %c32 = arith.constant 32 : index
    %c0_1 = arith.constant 0 : index
    %1 = vector.load %arg2[%c32, %c0_1] : memref<288x128xf32, #tpu.memory_space<vmem>>, vector<128x128xf32>
    %c160 = arith.constant 160 : index
    %c0_2 = arith.constant 0 : index
    %2 = vector.load %arg2[%c160, %c0_2] : memref<288x128xf32, #tpu.memory_space<vmem>>, vector<128x128xf32>
    %c0_3 = arith.constant 0 : index
    %c0_4 = arith.constant 0 : index
    %3 = vector.load %arg3[%c0_3, %c0_4] : memref<3x128xf32, #tpu.memory_space<vmem>>, vector<1x128xf32>
    %c1 = arith.constant 1 : index
    %c0_5 = arith.constant 0 : index
    %4 = vector.load %arg3[%c1, %c0_5] : memref<3x128xf32, #tpu.memory_space<vmem>>, vector<1x128xf32>
    %c2 = arith.constant 2 : index
    %c0_6 = arith.constant 0 : index
    %5 = vector.load %arg3[%c2, %c0_6] : memref<3x128xf32, #tpu.memory_space<vmem>>, vector<1x16xf32>
    %c0_7 = arith.constant 0 : index
    %c0_8 = arith.constant 0 : index
    %6 = vector.load %arg1[%c0_7, %c0_8] : memref<8x32xf32, #tpu.memory_space<vmem>>, vector<8x32xf32>
    %cst = arith.constant dense<0.000000e+00> : vector<8x128xf32>
    %7 = tpu.matmul %6, %0, %cst {dimension_numbers = #tpu.dot_dimension_numbers<[1], [0], [0], [1], [0, 0, 1, 1], [], []>} : vector<8x32xf32>, vector<32x128xf32>, vector<8x128xf32> -> vector<8x128xf32>
    %8 = vector.broadcast %3 : vector<1x128xf32> to vector<8x128xf32>
    %9 = arith.addf %7, %8 : vector<8x128xf32>
    %cst_9 = arith.constant 0.000000e+00 : f32
    %10 = vector.broadcast %cst_9 : f32 to vector<8x128xf32>
    %11 = arith.maximumf %9, %10 : vector<8x128xf32>
    %cst_10 = arith.constant dense<0.000000e+00> : vector<8x128xf32>
    %12 = tpu.matmul %11, %1, %cst_10 {dimension_numbers = #tpu.dot_dimension_numbers<[1], [0], [0], [1], [0, 0, 1, 1], [], []>} : vector<8x128xf32>, vector<128x128xf32>, vector<8x128xf32> -> vector<8x128xf32>
    %13 = vector.broadcast %4 : vector<1x128xf32> to vector<8x128xf32>
    %14 = arith.addf %12, %13 : vector<8x128xf32>
    %cst_11 = arith.constant 0.000000e+00 : f32
    %15 = vector.broadcast %cst_11 : f32 to vector<8x128xf32>
    %16 = arith.maximumf %14, %15 : vector<8x128xf32>
    %cst_12 = arith.constant dense<0.000000e+00> : vector<8x128xf32>
    %17 = tpu.matmul %16, %2, %cst_12 {dimension_numbers = #tpu.dot_dimension_numbers<[1], [0], [0], [1], [0, 0, 1, 1], [], []>} : vector<8x128xf32>, vector<128x128xf32>, vector<8x128xf32> -> vector<8x128xf32>
    %18 = vector.extract_strided_slice %17 {offsets = [0, 0], sizes = [8, 16], strides = [1, 1]} : vector<8x128xf32> to vector<8x16xf32>
    %19 = vector.broadcast %5 : vector<1x16xf32> to vector<8x16xf32>
    %20 = arith.addf %18, %19 : vector<8x16xf32>
    %c0_13 = arith.constant 0 : index
    %c0_14 = arith.constant 0 : index
    %21 = vector.load %arg4[%c0_13, %c0_14] : memref<8x16xf32, #tpu.memory_space<vmem>>, vector<8x16xf32>
    tpu.vector_store %arg4[%c0_13, %c0_14], %20 {strides = array<i32>} : memref<8x16xf32, #tpu.memory_space<vmem>>, vector<8x16xf32>,
    return
  }
  func.func @transform_0(%arg0: i32) -> (i32, i32) {
    %c0_i32 = arith.constant 0 : i32
    %c0_i32_0 = arith.constant 0 : i32
    return %arg0, %c0_i32 : i32, i32
  }
  func.func @transform_1(%arg0: i32) -> (i32, i32) {
    %c0_i32 = arith.constant 0 : i32
    %c0_i32_0 = arith.constant 0 : i32
    %c0_i32_1 = arith.constant 0 : i32
    return %c0_i32, %c0_i32_0 : i32, i32
  }
  func.func @transform_2(%arg0: i32) -> (i32, i32) {
    %c0_i32 = arith.constant 0 : i32
    %c0_i32_0 = arith.constant 0 : i32
    %c0_i32_1 = arith.constant 0 : i32
    return %c0_i32, %c0_i32_0 : i32, i32
  }
  func.func @transform_3(%arg0: i32) -> (i32, i32) {
    %c0_i32 = arith.constant 0 : i32
    %c0_i32_0 = arith.constant 0 : i32
    return %arg0, %c0_i32 : i32, i32
  }
}

</mosaic_0001>

<llo_original>
// kernel: action_chunking_mlp.1
$region0: #{action_chunking_mlp.1}
  #allocation0 [shape = 'u32[]', space=smem, size = 0x4, offset = 0x4, fixed_abs, tag = 'smem constant byte address 0x4 - core index']
  #allocation1 [shape = 'u32[72,128]{1,0:T(1,128)}', space=vmem, size = 0x9000, scoped, tag = 'internal scratch']
  %s0 = inlined_call_operand.hbm [shape: f32[8,32], index: 0, kind: input, shape index: {}]
  %s1 = inlined_call_operand.hbm [shape: f32[288,128], index: 1, kind: input, shape index: {}]
  %s2 = inlined_call_operand.hbm [shape: f32[3,128], index: 2, kind: input, shape index: {}]
  %s3 = inlined_call_operand.hbm [shape: f32[8,16], index: 3, kind: output, shape index: {}]
  %s4 = sld [smem:[#allocation0]]
  $region34: #{action_chunking_mlp.1} parent=0
    _
  %s6 = ssub.s32 1, %s4
  %s7 = scalar_select 0, %s6, %s4
  $region1: #{action_chunking_mlp.1} parent=0
    #allocation2 [shape = 'u8[4096]{0}', space=vmem, size = 0x1000, scoped, tag = 'input window, operand 0, single buffered']
    #allocation3 [shape = 's32[1]{0}', space=sflag, size = 0x4, scoped, tag = 'scoped memory for action_chunking_mlp.1']
    #allocation4 [shape = 's32[1]{0}', space=sflag, size = 0x4, scoped, tag = 'scoped memory for action_chunking_mlp.1']
    #allocation5 [shape = 'u8[147456]{0}', space=vmem, size = 0x24000, scoped, tag = 'input window, operand 1, single buffered']
    #allocation6 [shape = 's32[1]{0}', space=sflag, size = 0x4, scoped, tag = 'scoped memory for action_chunking_mlp.1']
    #allocation7 [shape = 'u8[2048]{0}', space=vmem, size = 0x800, scoped, tag = 'input window, operand 2, single buffered']
    #allocation8 [shape = 'u8[4096]{0}', space=vmem, size = 0x1000, scoped, tag = 'output window, operand 0, single buffered']
    %8 = vsyncpa [#allocation3], 0
    %9 = vsyncpa [#allocation6], 0
    %10 = vsyncpa [#allocation4], 0
    // Predicated region
    $region2: #{action_chunking_mlp.1} parent=1 // pred_check
      _
    $region3: #{action_chunking_mlp.1} parent=1 // pred_check_branch
      %12 = sbr.rel (0) target = $region5
    $region4: #{action_chunking_mlp.1} parent=1 // pred_region
      %14 = vsyncadd [#allocation3], 0
      %s16 = sshll.u32 %s0, 4
      %s17 = int_to_ptr.hbm [resolvable:$true] %s16
      %s18 = sshll.u32 [#allocation2], 4
      %s19 = int_to_ptr.vmem [resolvable:$true] %s18
      %21 = dma.hbm_to_vmem [thread:$0]  %s17, 128, %s19, [#allocation3]
    $region5: #{action_chunking_mlp.1} parent=1 // pred_fallthru
      _
    // Predicated region
    $region6: #{action_chunking_mlp.1} parent=1 // pred_check
      _
    $region7: #{action_chunking_mlp.1} parent=1 // pred_check_branch
      %23 = sbr.rel (0) target = $region9
    $region8: #{action_chunking_mlp.1} parent=1 // pred_region
      %25 = vsyncadd [#allocation6], 0
      %s26 = sshll.u32 %s1, 4
      %s27 = int_to_ptr.hbm [resolvable:$true] %s26
      %s28 = sshll.u32 [#allocation5], 4
      %s29 = int_to_ptr.vmem [resolvable:$true] %s28
      %34 = dma.hbm_to_vmem [thread:$0]  %s27, 4608, %s29, [#allocation6], 128, 128, 8
    $region9: #{action_chunking_mlp.1} parent=1 // pred_fallthru
      _
    // Predicated region
    $region10: #{action_chunking_mlp.1} parent=1 // pred_check
      _
    $region11: #{action_chunking_mlp.1} parent=1 // pred_check_branch
      %36 = sbr.rel (0) target = $region13
    $region12: #{action_chunking_mlp.1} parent=1 // pred_region
      %38 = vsyncadd [#allocation6], 0
      %s40 = sshll.u32 %s2, 4
      %s41 = int_to_ptr.hbm [resolvable:$true] %s40
      %s42 = sshll.u32 [#allocation7], 4
      %s43 = int_to_ptr.vmem [resolvable:$true] %s42
      %45 = dma.hbm_to_vmem [thread:$0]  %s41, 64, %s43, [#allocation6]
    $region13: #{action_chunking_mlp.1} parent=1 // pred_fallthru
      _
    // Predicated region
    $region14: #{action_chunking_mlp.1} parent=1 // pred_check
      _
    $region15: #{action_chunking_mlp.1} parent=1 // pred_check_branch
      %47 = sbr.rel (0) target = $region17
    $region16: #{action_chunking_mlp.1} parent=1 // pred_region
      %49 = dma.done [#allocation3], 128
    $region17: #{action_chunking_mlp.1} parent=1 // pred_fallthru
      _
    // Predicated region
    $region18: #{action_chunking_mlp.1} parent=1 // pred_check
      _
    $region19: #{action_chunking_mlp.1} parent=1 // pred_check_branch
      %51 = sbr.rel (0) target = $region21
    $region20: #{action_chunking_mlp.1} parent=1 // pred_region
      %53 = dma.done [#allocation6], 4608
    $region21: #{action_chunking_mlp.1} parent=1 // pred_fallthru
      _
    // Predicated region
    $region22: #{action_chunking_mlp.1} parent=1 // pred_check
      _
    $region23: #{action_chunking_mlp.1} parent=1 // pred_check_branch
      %55 = sbr.rel (0) target = $region25
    $region24: #{action_chunking_mlp.1} parent=1 // pred_region
      %57 = dma.done [#allocation6], 64
    $region25: #{action_chunking_mlp.1} parent=1 // pred_fallthru
      _
    %v58 = vld [vmem:[#allocation5] sm:$0xff]
    %v59 = vld [vmem:[#allocation5 + $0x8] sm:$0xff]
    %v60 = vld [vmem:[#allocation5 + $0x10] sm:$0xff]
    %v61 = vld [vmem:[#allocation5 + $0x18] sm:$0xff]
    %v62 = vld [vmem:[#allocation5 + $0x20] sm:$0xff]
    %v63 = vld [vmem:[#allocation5 + $0x28] sm:$0xff]
    %v64 = vld [vmem:[#allocation5 + $0x30] sm:$0xff]
    %v65 = vld [vmem:[#allocation5 + $0x38] sm:$0xff]
    %v66 = vld [vmem:[#allocation5 + $0x40] sm:$0xff]
    %v67 = vld [vmem:[#allocation5 + $0x48] sm:$0xff]
    %v68 = vld [vmem:[#allocation5 + $0x50] sm:$0xff]
    %v69 = vld [vmem:[#allocation5 + $0x58] sm:$0xff]
    %v70 = vld [vmem:[#allocation5 + $0x60] sm:$0xff]
    %v71 = vld [vmem:[#allocation5 + $0x68] sm:$0xff]
    %v72 = vld [vmem:[#allocation5 + $0x70] sm:$0xff]
    %v73 = vld [vmem:[#allocation5 + $0x78] sm:$0xff]
    %v74 = vld [vmem:[#allocation5 + $0x80] sm:$0xff]
    %v75 = vld [vmem:[#allocation5 + $0x88] sm:$0xff]
    %v76 = vld [vmem:[#allocation5 + $0x90] sm:$0xff]
    %v77 = vld [vmem:[#allocation5 + $0x98] sm:$0xff]
    %v78 = vld [vmem:[#allocation5 + $0xa0] sm:$0xff]
    %v79 = vld [vmem:[#allocation5 + $0xa8] sm:$0xff]
    %v80 = vld [vmem:[#allocation5 + $0xb0] sm:$0xff]
    %v81 = vld [vmem:[#allocation5 + $0xb8] sm:$0xff]
    %v82 = vld [vmem:[#allocation5 + $0xc0] sm:$0xff]
    %v83 = vld [vmem:[#allocation5 + $0xc8] sm:$0xff]
    %v84 = vld [vmem:[#allocation5 + $0xd0] sm:$0xff]
    %v85 = vld [vmem:[#allocation5 + $0xd8] sm:$0xff]
    %v86 = vld [vmem:[#allocation5 + $0xe0] sm:$0xff]
    %v87 = vld [vmem:[#allocation5 + $0xe8] sm:$0xff]
    %v88 = vld [vmem:[#allocation5 + $0xf0] sm:$0xff]
    %v89 = vld [vmem:[#allocation5 + $0xf8] sm:$0xff]
    %v90 = vld [vmem:[#allocation5 + $0x100] sm:$0xff]
    %v91 = vld [vmem:[#allocation5 + $0x108] sm:$0xff]
    %v92 = vld [vmem:[#allocation5 + $0x110] sm:$0xff]
    %v93 = vld [vmem:[#allocation5 + $0x118] sm:$0xff]
    %v94 = vld [vmem:[#allocation7] sm:$0x1]
    %v95 = vld [vmem:[#allocation7 + $0x1] sm:$0x1]
    %v96 = vld [vmem:[#allocation7 + $0x2] sm:$0x1]
    %v97 = vld [vmem:[#allocation2] sm:$0xff]
    %v98 = vperm.slane %v94, 0
    %vm99 = vcmask 261120
    %v101 = vsel %vm99, %v97, 0
    %103 = vmatpush.msra.mxu0 0.0
    %104 = vmatpush.msra.mxu0 0.0
    %105 = vmatpush.msra.mxu0 0.0
    %106 = vmatpush.msra.mxu0 0.0
    %107 = vmatpush.msra.mxu0 0.0
    %108 = vmatpush.msra.mxu0 0.0
    %109 = vmatpush.msra.mxu0 0.0
    %110 = vmatpush.msra.mxu0 0.0
    %111 = vmatpush.msra.mxu0 0.0
    %112 = vmatpush.msra.mxu0 0.0
    %113 = vmatpush.msra.mxu0 0.0
    %114 = vmatpush.msra.mxu0 0.0
    %115 = vmatpush.msra.mxu0 %v61
    %116 = vmatpush.msra.mxu0 %v60
    %117 = vmatpush.msra.mxu0 %v59
    %118 = vmatpush.msra.mxu0 %v58
    %119 = vmatmul.f32.gmra.mxu0 %v101
    %v120 = vpop.f32.mrf.mxu0
    %v121 = vadd.f32 %v98, %v120
    %122 = vdwg.mxu0
    %v123 = vmax.f32 %v121, 0.0
    %v124 = vperm.slane %v95, 0
    %125 = vmatpush.msra.mxu0 %v77
    %126 = vmatpush.msra.mxu0 %v76
    %127 = vmatpush.msra.mxu0 %v75
    %128 = vmatpush.msra.mxu0 %v74
    %129 = vmatpush.msra.mxu0 %v73
    %130 = vmatpush.msra.mxu0 %v72
    %131 = vmatpush.msra.mxu0 %v71
    %132 = vmatpush.msra.mxu0 %v70
    %133 = vmatpush.msra.mxu0 %v69
    %134 = vmatpush.msra.mxu0 %v68
    %135 = vmatpush.msra.mxu0 %v67
    %136 = vmatpush.msra.mxu0 %v66
    %137 = vmatpush.msra.mxu0 %v65
    %138 = vmatpush.msra.mxu0 %v64
    %139 = vmatpush.msra.mxu0 %v63
    %140 = vmatpush.msra.mxu0 %v62
    %141 = vmatmul.f32.gmra.mxu0 %v123
    %v142 = vpop.f32.mrf.mxu0
    %v143 = vadd.f32 %v124, %v142
    %144 = vdwg.mxu0
    %v145 = vmax.f32 %v143, 0.0
    %146 = vmatpush.msra.mxu0 %v93
    %147 = vmatpush.msra.mxu0 %v92
    %148 = vmatpush.msra.mxu0 %v91
    %149 = vmatpush.msra.mxu0 %v90
    %150 = vmatpush.msra.mxu0 %v89
    %151 = vmatpush.msra.mxu0 %v88
    %152 = vmatpush.msra.mxu0 %v87
    %153 = vmatpush.msra.mxu0 %v86
    %154 = vmatpush.msra.mxu0 %v85
    %155 = vmatpush.msra.mxu0 %v84
    %156 = vmatpush.msra.mxu0 %v83
    %157 = vmatpush.msra.mxu0 %v82
    %158 = vmatpush.msra.mxu0 %v81
    %159 = vmatpush.msra.mxu0 %v80
    %160 = vmatpush.msra.mxu0 %v79
    %161 = vmatpush.msra.mxu0 %v78
    %162 = vmatmul.f32.gmra.mxu0 %v145
    %v163 = vpop.f32.mrf.mxu0
    %v164 = vadd.f32 0.0, %v163
    %165 = vdwg.mxu0
    %v166 = vperm.slane %v96, 0
    %v167 = vadd.f32 %v164, %v166
    %vm168 = vcmask 130048
    %169 = vst.msk [vmem:[#allocation8] sm:$0xff] %vm168, %v167
    // Predicated region
    $region26: #{action_chunking_mlp.1} parent=1 // pred_check
      _
    $region27: #{action_chunking_mlp.1} parent=1 // pred_check_branch
      %171 = sbr.rel (0) target = $region29
    $region28: #{action_chunking_mlp.1} parent=1 // pred_region
      %173 = vsyncadd [#allocation4], 0
      %s175 = sshll.u32 [#allocation8], 4
      %s176 = int_to_ptr.vmem [resolvable:$true] %s175
      %s177 = sshll.u32 %s3, 4
      %s178 = int_to_ptr.hbm [resolvable:$true] %s177
      %180 = dma.vmem_to_hbm [thread:$0]  %s176, 128, %s178, [#allocation4]
    $region29: #{action_chunking_mlp.1} parent=1 // pred_fallthru
      _
    // Predicated region
    $region30: #{action_chunking_mlp.1} parent=1 // pred_check
      _
    $region31: #{action_chunking_mlp.1} parent=1 // pred_check_branch
      %182 = sbr.rel (0) target = $region33
    $region32: #{action_chunking_mlp.1} parent=1 // pred_region
      %184 = dma.done [#allocation4], 128
    $region33: #{action_chunking_mlp.1} parent=1 // pred_fallthru
      _
    %185 = vsyncpa [#allocation3], 1
    %186 = vsyncpa [#allocation6], 1
    %187 = vsyncpa [#allocation4], 1

</llo_original>
